<compile_context>
chip_gen: v7x
topology: tpu7x:2x2x1
jax: 0.10.0
libtpu: 0.0.40
codegen_flags: <defaults>
</compile_context>

<pallas_src>
import jax
import jax.numpy as jnp
from jax.experimental import pallas as pl
from jax.experimental.pallas import tpu as pltpu

L = 3
C = 64
NW = 4
USE_PRED = True
IN_FEAT = L * 3 + 2 if USE_PRED else L * 3
EPS = 1e-5


def selector_kernel(xd_ref, w1t_ref, w2t_ref, w3t_ref, ch_ref, o_ref):
    """Transposed layout: xd (IN_FEAT, N), activations (C, N), output (NW, N)."""
    # packed per-channel params (C, 5): cols = [g1, be1, g2, be2, b3(pad to C)]
    g1 = ch_ref[:, 0:1]
    be1 = ch_ref[:, 1:2]
    g2 = ch_ref[:, 2:3]
    be2 = ch_ref[:, 3:4]
    b3 = ch_ref[0:NW, 4:5]                                   # (NW, 1)

    xd = xd_ref[...]                                          # (IN_FEAT, N)
    w1t = w1t_ref[...]                                        # (C, IN_FEAT)

    # --- Linear(in_feat, C) (bias cancelled by train-mode BN) + BN + ReLU ---
    h = jnp.dot(w1t, xd, preferred_element_type=jnp.float32)   # (C, N)
    # batch mean via linearity: mean_b(W @ xd) = W @ mean_b(xd)  (tiny matmul)
    mu = jnp.dot(w1t, jnp.mean(xd, axis=-1, keepdims=True),
                 preferred_element_type=jnp.float32)            # (C, 1)
    msq = jnp.mean(h * h, axis=-1, keepdims=True)               # (C, 1)
    var = jnp.maximum(msq - mu * mu, 0.0)                       # biased var
    scale = g1 * jax.lax.rsqrt(var + EPS)                       # (C, 1) — tiny
    shift = be1 - mu * scale
    h = jnp.maximum(h * scale + shift, 0.0)                     # 2 full VPU ops + ReLU

    # --- Linear(C, C) (bias cancelled by train-mode BN) + BN + ReLU ---
    h2 = jnp.dot(w2t_ref[...], h, preferred_element_type=jnp.float32)  # (C, N)
    mu2 = jnp.mean(h2, axis=-1, keepdims=True)
    msq2 = jnp.mean(h2 * h2, axis=-1, keepdims=True)
    var2 = jnp.maximum(msq2 - mu2 * mu2, 0.0)
    scale2 = g2 * jax.lax.rsqrt(var2 + EPS)
    shift2 = be2 - mu2 * scale2
    h2 = jnp.maximum(h2 * scale2 + shift2, 0.0)

    # --- Linear(C, nW) + Softmax over the nW (sublane) axis ---
    logits = jnp.dot(w3t_ref[...], h2,
                     preferred_element_type=jnp.float32) + b3   # (NW, N)
    m = jnp.max(logits, axis=0, keepdims=True)
    e = jnp.exp(logits - m)
    s = jnp.sum(e, axis=0, keepdims=True)
    o_ref[...] = e / s                                          # exact normalization


def init_params(key):
    """PyTorch-style parameter set (linear biases included, as in nn.Linear)."""
    ks = jax.random.split(key, 10)
    # Linear weights stored as (in, out) so the reference math is x @ W + b
    w1 = jax.random.normal(ks[0], (IN_FEAT, C), jnp.float32) * 0.2
    b1 = jax.random.normal(ks[1], (1, C), jnp.float32) * 0.05
    w2 = jax.random.normal(ks[2], (C, C), jnp.float32) * 0.1
    b2 = jax.random.normal(ks[3], (1, C), jnp.float32) * 0.05
    w3 = jax.random.normal(ks[4], (C, NW), jnp.float32) * 0.1
    b3 = jax.random.normal(ks[5], (1, NW), jnp.float32) * 0.05
    # BatchNorm affine params (PyTorch default gamma=1, beta=0; perturb gamma
    # so the affine path is exercised)
    g1 = 1.0 + 0.1 * jax.random.normal(ks[6], (1, C), jnp.float32)
    be1 = jnp.zeros((1, C), jnp.float32)
    g2 = 1.0 + 0.1 * jax.random.normal(ks[7], (1, C), jnp.float32)
    be2 = jnp.zeros((1, C), jnp.float32)
    return dict(w1=w1, b1=b1, g1=g1, be1=be1,
                w2=w2, b2=b2, g2=g2, be2=be2,
                w3=w3, b3=b3)


def pack_params(p):
    """One-time repack of PyTorch-style params into kernel-ready (transposed) operands."""
    w1t = p["w1"].T                       # (C, IN_FEAT)
    w2t = p["w2"].T                       # (C, C)
    w3t = p["w3"].T                       # (NW, C)
    # All per-channel vectors packed into a single (C, 5) tile -> one DMA.
    b3_col = jnp.zeros((C, 1), jnp.float32).at[:NW, 0].set(p["b3"][0])
    chans = jnp.concatenate(
        [p["g1"].T, p["be1"].T, p["g2"].T, p["be2"].T, b3_col], axis=1)  # (C, 5)
    # b1 / b2 intentionally dropped: cancelled exactly by training-mode BN.
    return dict(w1t=w1t, w2t=w2t, w3t=w3t, chans=chans)


def selector_forward(x, d, kp):
    """x: (N, L, 3) float32, d: (N, 2) float32 -> (N, nW) float32."""
    N = x.shape[0]

    # Whole-batch-in-VMEM design (training-mode BN needs full-batch stats).
    # With the transposed (C, N) layout the live footprint at N=4096 is only a
    # few MiB of (64, N) f32 intermediates — well inside the scoped VMEM
    # default on v5e/v6e/v7x.
    if N > 4096:
        # TODO(synk): batch-chunked grid with two-phase (sum / sum-of-squares)
        # BatchNorm and 'parallel' dimension_semantics for large-N deployments.
        raise NotImplementedError("large-N path not implemented")

    # Tiny one-time data prep (outside the kernel): concat + transpose so the
    # kernel sees a single lane-dense (IN_FEAT, N) operand.
    xd_t = jnp.concatenate([x.reshape(N, L * 3), d], axis=-1).T   # (IN_FEAT, N)

    vmem_spec = pl.BlockSpec(memory_space=pltpu.MemorySpace.VMEM)
    out_t = pl.pallas_call(
        selector_kernel,
        out_shape=jax.ShapeDtypeStruct((NW, N), jnp.float32),     # lane-dense
        in_specs=[vmem_spec] * 5,
        out_specs=vmem_spec,
    )(xd_t, kp["w1t"], kp["w2t"], kp["w3t"], kp["chans"])
    return out_t.T                                                # (N, NW)


def _batchnorm_train_ref(h, gamma, beta):
    mu = jnp.mean(h, axis=0, keepdims=True)
    diff = h - mu
    var = jnp.mean(diff * diff, axis=0, keepdims=True)
    return diff * jax.lax.rsqrt(var + EPS) * gamma + beta


def selector_reference(x, d, p):
    """Pure-JAX reference faithful to the PyTorch module (biases included)."""
    N = x.shape[0]
    h = x.reshape(N, L * 3)
    if USE_PRED:
        h = jnp.concatenate([h, d], axis=-1)
    h = h @ p["w1"] + p["b1"]
    h = _batchnorm_train_ref(h, p["g1"], p["be1"])
    h = jnp.maximum(h, 0.0)
    h = h @ p["w2"] + p["b2"]
    h = _batchnorm_train_ref(h, p["g2"], p["be2"])
    h = jnp.maximum(h, 0.0)
    logits = h @ p["w3"] + p["b3"]
    return jax.nn.softmax(logits, axis=-1)


if __name__ == "__main__":
    key = jax.random.PRNGKey(0)
    kx, kd, kp = jax.random.split(key, 3)

    N = 8  # batch
    x = jax.random.normal(kx, (N, L, 3), jnp.float32)    # (N, L, 3) poses
    d = jax.random.normal(kd, (N, 2), jnp.float32)        # (N, 2) depths
    params = init_params(kp)
    kparams = pack_params(params)    # one-time repack (outside the hot path)

    out = jax.block_until_ready(selector_forward(x, d, kparams))
    ref = selector_reference(x, d, params)

    assert out.shape == (N, NW)
    # rows of a softmax sum to 1 (exact normalization in the kernel)
    assert jnp.allclose(jnp.sum(out, axis=-1), 1.0, atol=1e-5)
    # small fp-level differences from the (mathematically exact) bias
    # cancellation, the fused BN scale/shift, and the E[h^2]-mu^2 variance form
    assert jnp.allclose(out, ref, atol=1e-4, rtol=1e-4)

    print("KERNEL_OK")
</pallas_src>

<mosaic_0001>
module attributes {stable_mosaic.version = 11 : i64} {
  func.func @selector_kernel(%arg0: memref<11x8xf32, #tpu.memory_space<vmem>>, %arg1: memref<64x11xf32, #tpu.memory_space<vmem>>, %arg2: memref<64x64xf32, #tpu.memory_space<vmem>>, %arg3: memref<4x64xf32, #tpu.memory_space<vmem>>, %arg4: memref<64x5xf32, #tpu.memory_space<vmem>>, %arg5: memref<4x8xf32, #tpu.memory_space<vmem>>) attributes {dimension_semantics = [], scalar_prefetch = 0 : i64, scratch_operands = 0 : i64, tpu.core_type = #tpu.core_type<tc>} {
    %c0 = arith.constant 0 : index
    %c0_0 = arith.constant 0 : index
    %0 = vector.load %arg4[%c0, %c0_0] : memref<64x5xf32, #tpu.memory_space<vmem>>, vector<64x1xf32>
    %c0_1 = arith.constant 0 : index
    %c1 = arith.constant 1 : index
    %1 = vector.load %arg4[%c0_1, %c1] : memref<64x5xf32, #tpu.memory_space<vmem>>, vector<64x1xf32>
    %c0_2 = arith.constant 0 : index
    %c2 = arith.constant 2 : index
    %2 = vector.load %arg4[%c0_2, %c2] : memref<64x5xf32, #tpu.memory_space<vmem>>, vector<64x1xf32>
    %c0_3 = arith.constant 0 : index
    %c3 = arith.constant 3 : index
    %3 = vector.load %arg4[%c0_3, %c3] : memref<64x5xf32, #tpu.memory_space<vmem>>, vector<64x1xf32>
    %c0_4 = arith.constant 0 : index
    %c4 = arith.constant 4 : index
    %4 = vector.load %arg4[%c0_4, %c4] : memref<64x5xf32, #tpu.memory_space<vmem>>, vector<4x1xf32>
    %c0_5 = arith.constant 0 : index
    %c0_6 = arith.constant 0 : index
    %5 = vector.load %arg0[%c0_5, %c0_6] : memref<11x8xf32, #tpu.memory_space<vmem>>, vector<11x8xf32>
    %c0_7 = arith.constant 0 : index
    %c0_8 = arith.constant 0 : index
    %6 = vector.load %arg1[%c0_7, %c0_8] : memref<64x11xf32, #tpu.memory_space<vmem>>, vector<64x11xf32>
    %cst = arith.constant dense<0.000000e+00> : vector<64x8xf32>
    %7 = tpu.matmul %6, %5, %cst {dimension_numbers = #tpu.dot_dimension_numbers<[1], [0], [0], [1], [0, 0, 1, 1], [], []>} : vector<64x11xf32>, vector<11x8xf32>, vector<64x8xf32> -> vector<64x8xf32>
    %cst_9 = arith.constant dense<0.000000e+00> : vector<11xf32>
    %8 = vector.multi_reduction <add>, %5, %cst_9 [1] : vector<11x8xf32> to vector<11xf32>
    %9 = vector.shape_cast %8 : vector<11xf32> to vector<11x1xf32>
    %cst_10 = arith.constant 8.000000e+00 : f32
    %10 = vector.broadcast %cst_10 : f32 to vector<11x1xf32>
    %11 = arith.divf %9, %10 : vector<11x1xf32>
    %cst_11 = arith.constant dense<0.000000e+00> : vector<64x1xf32>
    %12 = tpu.matmul %6, %11, %cst_11 {dimension_numbers = #tpu.dot_dimension_numbers<[1], [0], [0], [1], [0, 0, 1, 1], [], []>} : vector<64x11xf32>, vector<11x1xf32>, vector<64x1xf32> -> vector<64x1xf32>
    %13 = arith.mulf %7, %7 : vector<64x8xf32>
    %cst_12 = arith.constant dense<0.000000e+00> : vector<64xf32>
    %14 = vector.multi_reduction <add>, %13, %cst_12 [1] : vector<64x8xf32> to vector<64xf32>
    %15 = vector.shape_cast %14 : vector<64xf32> to vector<64x1xf32>
    %cst_13 = arith.constant 8.000000e+00 : f32
    %16 = vector.broadcast %cst_13 : f32 to vector<64x1xf32>
    %17 = arith.divf %15, %16 : vector<64x1xf32>
    %18 = arith.mulf %12, %12 : vector<64x1xf32>
    %19 = arith.subf %17, %18 : vector<64x1xf32>
    %cst_14 = arith.constant 0.000000e+00 : f32
    %20 = vector.broadcast %cst_14 : f32 to vector<64x1xf32>
    %21 = arith.maximumf %19, %20 : vector<64x1xf32>
    %cst_15 = arith.constant 9.99999974E-6 : f32
    %22 = vector.broadcast %cst_15 : f32 to vector<64x1xf32>
    %23 = arith.addf %21, %22 : vector<64x1xf32>
    %24 = math.rsqrt %23 : vector<64x1xf32>
    %25 = arith.mulf %0, %24 : vector<64x1xf32>
    %26 = arith.mulf %12, %25 : vector<64x1xf32>
    %27 = arith.subf %1, %26 : vector<64x1xf32>
    %28 = vector.broadcast %25 : vector<64x1xf32> to vector<64x8xf32>
    %29 = arith.mulf %7, %28 : vector<64x8xf32>
    %30 = vector.broadcast %27 : vector<64x1xf32> to vector<64x8xf32>
    %31 = arith.addf %29, %30 : vector<64x8xf32>
    %cst_16 = arith.constant 0.000000e+00 : f32
    %32 = vector.broadcast %cst_16 : f32 to vector<64x8xf32>
    %33 = arith.maximumf %31, %32 : vector<64x8xf32>
    %c0_17 = arith.constant 0 : index
    %c0_18 = arith.constant 0 : index
    %34 = vector.load %arg2[%c0_17, %c0_18] : memref<64x64xf32, #tpu.memory_space<vmem>>, vector<64x64xf32>
    %cst_19 = arith.constant dense<0.000000e+00> : vector<64x8xf32>
    %35 = tpu.matmul %34, %33, %cst_19 {dimension_numbers = #tpu.dot_dimension_numbers<[1], [0], [0], [1], [0, 0, 1, 1], [], []>} : vector<64x64xf32>, vector<64x8xf32>, vector<64x8xf32> -> vector<64x8xf32>
    %cst_20 = arith.constant dense<0.000000e+00> : vector<64xf32>
    %36 = vector.multi_reduction <add>, %35, %cst_20 [1] : vector<64x8xf32> to vector<64xf32>
    %37 = vector.shape_cast %36 : vector<64xf32> to vector<64x1xf32>
    %cst_21 = arith.constant 8.000000e+00 : f32
    %38 = vector.broadcast %cst_21 : f32 to vector<64x1xf32>
    %39 = arith.divf %37, %38 : vector<64x1xf32>
    %40 = arith.mulf %35, %35 : vector<64x8xf32>
    %cst_22 = arith.constant dense<0.000000e+00> : vector<64xf32>
    %41 = vector.multi_reduction <add>, %40, %cst_22 [1] : vector<64x8xf32> to vector<64xf32>
    %42 = vector.shape_cast %41 : vector<64xf32> to vector<64x1xf32>
    %cst_23 = arith.constant 8.000000e+00 : f32
    %43 = vector.broadcast %cst_23 : f32 to vector<64x1xf32>
    %44 = arith.divf %42, %43 : vector<64x1xf32>
    %45 = arith.mulf %39, %39 : vector<64x1xf32>
    %46 = arith.subf %44, %45 : vector<64x1xf32>
    %cst_24 = arith.constant 0.000000e+00 : f32
    %47 = vector.broadcast %cst_24 : f32 to vector<64x1xf32>
    %48 = arith.maximumf %46, %47 : vector<64x1xf32>
    %cst_25 = arith.constant 9.99999974E-6 : f32
    %49 = vector.broadcast %cst_25 : f32 to vector<64x1xf32>
    %50 = arith.addf %48, %49 : vector<64x1xf32>
    %51 = math.rsqrt %50 : vector<64x1xf32>
    %52 = arith.mulf %2, %51 : vector<64x1xf32>
    %53 = arith.mulf %39, %52 : vector<64x1xf32>
    %54 = arith.subf %3, %53 : vector<64x1xf32>
    %55 = vector.broadcast %52 : vector<64x1xf32> to vector<64x8xf32>
    %56 = arith.mulf %35, %55 : vector<64x8xf32>
    %57 = vector.broadcast %54 : vector<64x1xf32> to vector<64x8xf32>
    %58 = arith.addf %56, %57 : vector<64x8xf32>
    %cst_26 = arith.constant 0.000000e+00 : f32
    %59 = vector.broadcast %cst_26 : f32 to vector<64x8xf32>
    %60 = arith.maximumf %58, %59 : vector<64x8xf32>
    %c0_27 = arith.constant 0 : index
    %c0_28 = arith.constant 0 : index
    %61 = vector.load %arg3[%c0_27, %c0_28] : memref<4x64xf32, #tpu.memory_space<vmem>>, vector<4x64xf32>
    %cst_29 = arith.constant dense<0.000000e+00> : vector<4x8xf32>
    %62 = tpu.matmul %61, %60, %cst_29 {dimension_numbers = #tpu.dot_dimension_numbers<[1], [0], [0], [1], [0, 0, 1, 1], [], []>} : vector<4x64xf32>, vector<64x8xf32>, vector<4x8xf32> -> vector<4x8xf32>
    %63 = vector.broadcast %4 : vector<4x1xf32> to vector<4x8xf32>
    %64 = arith.addf %62, %63 : vector<4x8xf32>
    %cst_30 = arith.constant dense<0xFF800000> : vector<8xf32>
    %65 = vector.multi_reduction <maximumf>, %64, %cst_30 [0] : vector<4x8xf32> to vector<8xf32>
    %66 = vector.shape_cast %65 : vector<8xf32> to vector<1x8xf32>
    %67 = vector.broadcast %66 : vector<1x8xf32> to vector<4x8xf32>
    %68 = arith.subf %64, %67 : vector<4x8xf32>
    %69 = math.exp %68 : vector<4x8xf32>
    %cst_31 = arith.constant dense<0.000000e+00> : vector<8xf32>
    %70 = vector.multi_reduction <add>, %69, %cst_31 [0] : vector<4x8xf32> to vector<8xf32>
    %71 = vector.shape_cast %70 : vector<8xf32> to vector<1x8xf32>
    %72 = vector.broadcast %71 : vector<1x8xf32> to vector<4x8xf32>
    %73 = arith.divf %69, %72 : vector<4x8xf32>
    %c0_32 = arith.constant 0 : index
    %c0_33 = arith.constant 0 : index
    %74 = vector.load %arg5[%c0_32, %c0_33] : memref<4x8xf32, #tpu.memory_space<vmem>>, vector<4x8xf32>
    tpu.vector_store %arg5[%c0_32, %c0_33], %73 {strides = array<i32>} : memref<4x8xf32, #tpu.memory_space<vmem>>, vector<4x8xf32>,
    return
  }
}

</mosaic_0001>

<llo_original>
// kernel: tpu_custom_call.1
$region0: #{tpu_custom_call.1}
  #allocation0 [shape = 'u32[]', space=smem, size = 0x4, offset = 0x4, fixed_abs, tag = 'smem constant byte address 0x4 - core index']
  #allocation1 [shape = 'u32[144,128]{1,0:T(1,128)}', space=vmem, size = 0x12000, scoped, tag = 'internal scratch']
  %s0 = inlined_call_operand.vmem [shape: f32[11,8], index: 0, kind: input, shape index: {}]
  %s1 = inlined_call_operand.vmem [shape: f32[64,11], index: 1, kind: input, shape index: {}]
  %s2 = inlined_call_operand.vmem [shape: f32[64,64], index: 2, kind: input, shape index: {}]
  %s3 = inlined_call_operand.vmem [shape: f32[4,64], index: 3, kind: input, shape index: {}]
  %s4 = inlined_call_operand.vmem [shape: f32[64,5], index: 4, kind: input, shape index: {}]
  %s5 = inlined_call_operand.hbm [shape: f32[4,8], index: 5, kind: output, shape index: {}]
  %s6 = sld [smem:[#allocation0]]
  $region30: #{tpu_custom_call.1} parent=0
    _
  %s8 = ssub.s32 1, %s6
  %s9 = scalar_select 0, %s8, %s6
  $region1: #{tpu_custom_call.1} parent=0
    #allocation2 [shape = 'u8[2048]{0}', space=vmem, size = 0x800, scoped, tag = 'output window, operand 0, single buffered']
    #allocation3 [shape = 's32[1]{0}', space=sflag, size = 0x4, scoped, tag = 'scoped memory for tpu_custom_call.1']
    %10 = vsyncpa [#allocation3], 0
    // Predicated region
    $region2: #{tpu_custom_call.1} parent=1 // pred_check
      _
    $region3: #{tpu_custom_call.1} parent=1 // pred_check_branch
      %12 = sbr.rel (0) target = $region5
    $region4: #{tpu_custom_call.1} parent=1 // pred_region
      _
    $region5: #{tpu_custom_call.1} parent=1 // pred_fallthru
      _
    // Predicated region
    $region6: #{tpu_custom_call.1} parent=1 // pred_check
      _
    $region7: #{tpu_custom_call.1} parent=1 // pred_check_branch
      %14 = sbr.rel (0) target = $region9
    $region8: #{tpu_custom_call.1} parent=1 // pred_region
      _
    $region9: #{tpu_custom_call.1} parent=1 // pred_fallthru
      _
    // Predicated region
    $region10: #{tpu_custom_call.1} parent=1 // pred_check
      _
    $region11: #{tpu_custom_call.1} parent=1 // pred_check_branch
      %16 = sbr.rel (0) target = $region13
    $region12: #{tpu_custom_call.1} parent=1 // pred_region
      _
    $region13: #{tpu_custom_call.1} parent=1 // pred_fallthru
      _
    // Predicated region
    $region14: #{tpu_custom_call.1} parent=1 // pred_check
      _
    $region15: #{tpu_custom_call.1} parent=1 // pred_check_branch
      %18 = sbr.rel (0) target = $region17
    $region16: #{tpu_custom_call.1} parent=1 // pred_region
      _
    $region17: #{tpu_custom_call.1} parent=1 // pred_fallthru
      _
    // Predicated region
    $region18: #{tpu_custom_call.1} parent=1 // pred_check
      _
    $region19: #{tpu_custom_call.1} parent=1 // pred_check_branch
      %20 = sbr.rel (0) target = $region21
    $region20: #{tpu_custom_call.1} parent=1 // pred_region
      _
    $region21: #{tpu_custom_call.1} parent=1 // pred_fallthru
      _
    %v21 = vld [vmem:[%s4] sm:$0xff]
    %v22 = vld [vmem:[%s4 + $0x8] sm:$0xff]
    %v23 = vld [vmem:[%s4 + $0x10] sm:$0xff]
    %v24 = vld [vmem:[%s4 + $0x18] sm:$0xff]
    %v25 = vld [vmem:[%s4 + $0x20] sm:$0xff]
    %v26 = vld [vmem:[%s4 + $0x28] sm:$0xff]
    %v27 = vld [vmem:[%s4 + $0x30] sm:$0xff]
    %v28 = vld [vmem:[%s4 + $0x38] sm:$0xff]
    %v29 = vld [vmem:[%s4] sm:$0xf]
    %v30 = vld [vmem:[%s0] sm:$0xff]
    %v31 = vld [vmem:[%s0 + $0x8] sm:$0x7]
    %v32 = vld [vmem:[%s1] sm:$0xff]
    %v33 = vld [vmem:[%s1 + $0x8] sm:$0xff]
    %v34 = vld [vmem:[%s1 + $0x10] sm:$0xff]
    %v35 = vld [vmem:[%s1 + $0x18] sm:$0xff]
    %v36 = vld [vmem:[%s1 + $0x20] sm:$0xff]
    %v37 = vld [vmem:[%s1 + $0x28] sm:$0xff]
    %v38 = vld [vmem:[%s1 + $0x30] sm:$0xff]
    %v39 = vld [vmem:[%s1 + $0x38] sm:$0xff]
    %vm40 = vcmask 89088
    %v42 = vsel %vm40, %v32, 0
    %v45 = vsel %vm40, %v33, 0
    %v48 = vsel %vm40, %v34, 0
    %v51 = vsel %vm40, %v35, 0
    %v54 = vsel %vm40, %v36, 0
    %v57 = vsel %vm40, %v37, 0
    %v60 = vsel %vm40, %v38, 0
    %v63 = vsel %vm40, %v39, 0
    %vm65 = vcmask 1042432
    %v67 = vsel %vm65, %v31, 0
    %69 = vmatprep.subr.mxu0 0.0
    %70 = vmatpush1.msra.mxu0 %v30
    %71 = vmatprep.subr.mxu0 0.0
    %72 = vmatpush1.msra.mxu0 %v67
    %73 = vmatprep.subr.mxu0 0.0
    %74 = vmatpush1.msra.mxu0 0.0
    %75 = vmatprep.subr.mxu0 0.0
    %76 = vmatpush1.msra.mxu0 0.0
    %77 = vmatprep.subr.mxu0 0.0
    %78 = vmatpush1.msra.mxu0 0.0
    %79 = vmatprep.subr.mxu0 0.0
    %80 = vmatpush1.msra.mxu0 0.0
    %81 = vmatprep.subr.mxu0 0.0
    %82 = vmatpush1.msra.mxu0 0.0
    %83 = vmatprep.subr.mxu0 0.0
    %84 = vmatpush1.msra.mxu0 0.0
    %85 = vmatprep.subr.mxu0 0.0
    %86 = vmatpush1.msra.mxu0 0.0
    %87 = vmatprep.subr.mxu0 0.0
    %88 = vmatpush1.msra.mxu0 0.0
    %89 = vmatprep.subr.mxu0 0.0
    %90 = vmatpush1.msra.mxu0 0.0
    %91 = vmatprep.subr.mxu0 0.0
    %92 = vmatpush1.msra.mxu0 0.0
    %93 = vmatprep.subr.mxu0 0.0
    %94 = vmatpush1.msra.mxu0 0.0
    %95 = vmatprep.subr.mxu0 0.0
    %96 = vmatpush1.msra.mxu0 0.0
    %97 = vmatprep.subr.mxu0 0.0
    %98 = vmatpush1.msra.mxu0 0.0
    %99 = vmatprep.subr.mxu0 0.0
    %100 = vmatpush1.msra.mxu0 0.0
    %101 = vmatprep.subr.mxu0 0.0
    %102 = vmatpush1.msra.mxu0 0.0
    %103 = vmatprep.subr.mxu0 0.0
    %104 = vmatpush1.msra.mxu0 0.0
    %105 = vmatprep.subr.mxu0 0.0
    %106 = vmatpush1.msra.mxu0 0.0
    %107 = vmatprep.subr.mxu0 0.0
    %108 = vmatpush1.msra.mxu0 0.0
    %109 = vmatprep.subr.mxu0 0.0
    %110 = vmatpush1.msra.mxu0 0.0
    %111 = vmatprep.subr.mxu0 0.0
    %112 = vmatpush1.msra.mxu0 0.0
    %113 = vmatprep.subr.mxu0 0.0
    %114 = vmatpush1.msra.mxu0 0.0
    %115 = vmatprep.subr.mxu0 0.0
    %116 = vmatpush1.msra.mxu0 0.0
    %117 = vmatprep.subr.mxu0 0.0
    %118 = vmatpush1.msra.mxu0 0.0
    %119 = vmatprep.subr.mxu0 0.0
    %120 = vmatpush1.msra.mxu0 0.0
    %121 = vmatprep.subr.mxu0 0.0
    %122 = vmatpush1.msra.mxu0 0.0
    %123 = vmatprep.subr.mxu0 0.0
    %124 = vmatpush1.msra.mxu0 0.0
    %125 = vmatprep.subr.mxu0 0.0
    %126 = vmatpush1.msra.mxu0 0.0
    %127 = vmatprep.subr.mxu0 0.0
    %128 = vmatpush1.msra.mxu0 0.0
    %129 = vmatprep.subr.mxu0 0.0
    %130 = vmatpush1.msra.mxu0 0.0
    %131 = vmatprep.subr.mxu0 0.0
    %132 = vmatpush1.msra.mxu0 0.0
    %133 = vmatprep.mubr.f32.mxu0 0.0
    %134 = vmatmul.mubr.f32.gmra.mrb[0].mxu0 %v42
    %v135 = vpop.f32.mrb[0].mxu0
    %v136 = vadd.f32 0.0, %v135
    %v137 = vpop.f32.mrb[0].mxu0
    %138 = vmatprep.mubr.f32.mxu0 0.0
    %139 = vmatmul.mubr.f32.gmra.mrb[0].mxu0 %v45
    %v140 = vpop.f32.mrb[0].mxu0
    %v141 = vadd.f32 0.0, %v140
    %v142 = vpop.f32.mrb[0].mxu0
    %143 = vmatprep.mubr.f32.mxu0 0.0
    %144 = vmatmul.mubr.f32.gmra.mrb[0].mxu0 %v48
    %v145 = vpop.f32.mrb[0].mxu0
    %v146 = vadd.f32 0.0, %v145
    %v147 = vpop.f32.mrb[0].mxu0
    %148 = vmatprep.mubr.f32.mxu0 0.0
    %149 = vmatmul.mubr.f32.gmra.mrb[0].mxu0 %v51
    %v150 = vpop.f32.mrb[0].mxu0
    %v151 = vadd.f32 0.0, %v150
    %v152 = vpop.f32.mrb[0].mxu0
    %153 = vmatprep.mubr.f32.mxu0 0.0
    %154 = vmatmul.mubr.f32.gmra.mrb[0].mxu0 %v54
    %v155 = vpop.f32.mrb[0].mxu0
    %v156 = vadd.f32 0.0, %v155
    %v157 = vpop.f32.mrb[0].mxu0
    %158 = vmatprep.mubr.f32.mxu0 0.0
    %159 = vmatmul.mubr.f32.gmra.mrb[0].mxu0 %v57
    %v160 = vpop.f32.mrb[0].mxu0
    %v161 = vadd.f32 0.0, %v160
    %v162 = vpop.f32.mrb[0].mxu0
    %163 = vmatprep.mubr.f32.mxu0 0.0
    %164 = vmatmul.mubr.f32.gmra.mrb[0].mxu0 %v60
    %v165 = vpop.f32.mrb[0].mxu0
    %v166 = vadd.f32 0.0, %v165
    %v167 = vpop.f32.mrb[0].mxu0
    %168 = vmatprep.mubr.f32.mxu0 0.0
    %169 = vmatmul.mubr.f32.gmra.mrb[0].mxu0 %v63
    %v170 = vpop.f32.mrb[0].mxu0
    %v171 = vadd.f32 0.0, %v170
    %v172 = vpop.f32.mrb[0].mxu0
    %173 = vdwg.mxu0
    %vm174 = vcmask 64512
    %v175 = vsel %vm174, %v30, 0.0
    %176 = vadd.xlane.f32.xlu0 %v175
    %v177 = vpop.xlane.xlu0 %176
    %vm178 = vcmask 59392
    %v179 = vsel %vm178, %v31, 0.0
    %180 = vadd.xlane.f32.xlu0 %v179
    %v181 = vpop.xlane.xlu0 %180
    %v182 = vrcp.pop 8.0
    %v183 = vmul.f32 %v177, %v182
    %v184 = vmul.f32 %v181, %v182
    %v186 = vsel %vm65, %v184, 0
    %188 = vmatprep.subr.mxu0 0.0
    %189 = vmatpush1.msra.mxu0 %v183
    %190 = vmatprep.subr.mxu0 0.0
    %191 = vmatpush1.msra.mxu0 %v186
    %192 = vmatprep.subr.mxu0 0.0
    %193 = vmatpush1.msra.mxu0 0.0
    %194 = vmatprep.subr.mxu0 0.0
    %195 = vmatpush1.msra.mxu0 0.0
    %196 = vmatprep.subr.mxu0 0.0
    %197 = vmatpush1.msra.mxu0 0.0
    %198 = vmatprep.subr.mxu0 0.0
    %199 = vmatpush1.msra.mxu0 0.0
    %200 = vmatprep.subr.mxu0 0.0
    %201 = vmatpush1.msra.mxu0 0.0
    %202 = vmatprep.subr.mxu0 0.0
    %203 = vmatpush1.msra.mxu0 0.0
    %204 = vmatprep.subr.mxu0 0.0
    %205 = vmatpush1.msra.mxu0 0.0
    %206 = vmatprep.subr.mxu0 0.0
    %207 = vmatpush1.msra.mxu0 0.0
    %208 = vmatprep.subr.mxu0 0.0
    %209 = vmatpush1.msra.mxu0 0.0
    %210 = vmatprep.subr.mxu0 0.0
    %211 = vmatpush1.msra.mxu0 0.0
    %212 = vmatprep.subr.mxu0 0.0
    %213 = vmatpush1.msra.mxu0 0.0
    %214 = vmatprep.subr.mxu0 0.0
    %215 = vmatpush1.msra.mxu0 0.0
    %216 = vmatprep.subr.mxu0 0.0
    %217 = vmatpush1.msra.mxu0 0.0
    %218 = vmatprep.subr.mxu0 0.0
    %219 = vmatpush1.msra.mxu0 0.0
    %220 = vmatprep.subr.mxu0 0.0
    %221 = vmatpush1.msra.mxu0 0.0
    %222 = vmatprep.subr.mxu0 0.0
    %223 = vmatpush1.msra.mxu0 0.0
    %224 = vmatprep.subr.mxu0 0.0
    %225 = vmatpush1.msra.mxu0 0.0
    %226 = vmatprep.subr.mxu0 0.0
    %227 = vmatpush1.msra.mxu0 0.0
    %228 = vmatprep.subr.mxu0 0.0
    %229 = vmatpush1.msra.mxu0 0.0
    %230 = vmatprep.subr.mxu0 0.0
    %231 = vmatpush1.msra.mxu0 0.0
    %232 = vmatprep.subr.mxu0 0.0
    %233 = vmatpush1.msra.mxu0 0.0
    %234 = vmatprep.subr.mxu0 0.0
    %235 = vmatpush1.msra.mxu0 0.0
    %236 = vmatprep.subr.mxu0 0.0
    %237 = vmatpush1.msra.mxu0 0.0
    %238 = vmatprep.subr.mxu0 0.0
    %239 = vmatpush1.msra.mxu0 0.0
    %240 = vmatprep.subr.mxu0 0.0
    %241 = vmatpush1.msra.mxu0 0.0
    %242 = vmatprep.subr.mxu0 0.0
    %243 = vmatpush1.msra.mxu0 0.0
    %244 = vmatprep.subr.mxu0 0.0
    %245 = vmatpush1.msra.mxu0 0.0
    %246 = vmatprep.subr.mxu0 0.0
    %247 = vmatpush1.msra.mxu0 0.0
    %248 = vmatprep.subr.mxu0 0.0
    %249 = vmatpush1.msra.mxu0 0.0
    %250 = vmatprep.subr.mxu0 0.0
    %251 = vmatpush1.msra.mxu0 0.0
    %252 = vmatprep.mubr.f32.mxu0 0.0
    %253 = vmatmul.mubr.f32.gmra.mrb[0].mxu0 %v42
    %v254 = vpop.f32.mrb[0].mxu0
    %v255 = vadd.f32 0.0, %v254
    %v256 = vpop.f32.mrb[0].mxu0
    %257 = vmatprep.mubr.f32.mxu0 0.0
    %258 = vmatmul.mubr.f32.gmra.mrb[0].mxu0 %v45
    %v259 = vpop.f32.mrb[0].mxu0
    %v260 = vadd.f32 0.0, %v259
    %v261 = vpop.f32.mrb[0].mxu0
    %262 = vmatprep.mubr.f32.mxu0 0.0
    %263 = vmatmul.mubr.f32.gmra.mrb[0].mxu0 %v48
    %v264 = vpop.f32.mrb[0].mxu0
    %v265 = vadd.f32 0.0, %v264
    %v266 = vpop.f32.mrb[0].mxu0
    %267 = vmatprep.mubr.f32.mxu0 0.0
    %268 = vmatmul.mubr.f32.gmra.mrb[0].mxu0 %v51
    %v269 = vpop.f32.mrb[0].mxu0
    %v270 = vadd.f32 0.0, %v269
    %v271 = vpop.f32.mrb[0].mxu0
    %272 = vmatprep.mubr.f32.mxu0 0.0
    %273 = vmatmul.mubr.f32.gmra.mrb[0].mxu0 %v54
    %v274 = vpop.f32.mrb[0].mxu0
    %v275 = vadd.f32 0.0, %v274
    %v276 = vpop.f32.mrb[0].mxu0
    %277 = vmatprep.mubr.f32.mxu0 0.0
    %278 = vmatmul.mubr.f32.gmra.mrb[0].mxu0 %v57
    %v279 = vpop.f32.mrb[0].mxu0
    %v280 = vadd.f32 0.0, %v279
    %v281 = vpop.f32.mrb[0].mxu0
    %282 = vmatprep.mubr.f32.mxu0 0.0
    %283 = vmatmul.mubr.f32.gmra.mrb[0].mxu0 %v60
    %v284 = vpop.f32.mrb[0].mxu0
    %v285 = vadd.f32 0.0, %v284
    %v286 = vpop.f32.mrb[0].mxu0
    %287 = vmatprep.mubr.f32.mxu0 0.0
    %288 = vmatmul.mubr.f32.gmra.mrb[0].mxu0 %v63
    %v289 = vpop.f32.mrb[0].mxu0
    %v290 = vadd.f32 0.0, %v289
    %v291 = vpop.f32.mrb[0].mxu0
    %292 = vdwg.mxu0
    %v293 = vmul.f32 %v136, %v136
    %v294 = vmul.f32 %v141, %v141
    %v295 = vmul.f32 %v146, %v146
    %v296 = vmul.f32 %v151, %v151
    %v297 = vmul.f32 %v156, %v156
    %v298 = vmul.f32 %v161, %v161
    %v299 = vmul.f32 %v166, %v166
    %v300 = vmul.f32 %v171, %v171
    %v301 = vsel %vm174, %v293, 0.0
    %302 = vadd.xlane.f32.xlu0 %v301
    %v303 = vpop.xlane.xlu0 %302
    %v304 = vsel %vm174, %v294, 0.0
    %305 = vadd.xlane.f32.xlu0 %v304
    %v306 = vpop.xlane.xlu0 %305
    %v307 = vsel %vm174, %v295, 0.0
    %308 = vadd.xlane.f32.xlu0 %v307
    %v309 = vpop.xlane.xlu0 %308
    %v310 = vsel %vm174, %v296, 0.0
    %311 = vadd.xlane.f32.xlu0 %v310
    %v312 = vpop.xlane.xlu0 %311
    %v313 = vsel %vm174, %v297, 0.0
    %314 = vadd.xlane.f32.xlu0 %v313
    %v315 = vpop.xlane.xlu0 %314
    %v316 = vsel %vm174, %v298, 0.0
    %317 = vadd.xlane.f32.xlu0 %v316
    %v318 = vpop.xlane.xlu0 %317
    %v319 = vsel %vm174, %v299, 0.0
    %320 = vadd.xlane.f32.xlu0 %v319
    %v321 = vpop.xlane.xlu0 %320
    %v322 = vsel %vm174, %v300, 0.0
    %323 = vadd.xlane.f32.xlu0 %v322
    %v324 = vpop.xlane.xlu0 %323
    %v325 = vmul.f32 %v303, %v182
    %v326 = vmul.f32 %v306, %v182
    %v327 = vmul.f32 %v309, %v182
    %v328 = vmul.f32 %v312, %v182
    %v329 = vmul.f32 %v315, %v182
    %v330 = vmul.f32 %v318, %v182
    %v331 = vmul.f32 %v321, %v182
    %v332 = vmul.f32 %v324, %v182
    %v333 = vmul.f32 %v255, %v255
    %v334 = vmul.f32 %v260, %v260
    %v335 = vmul.f32 %v265, %v265
    %v336 = vmul.f32 %v270, %v270
    %v337 = vmul.f32 %v275, %v275
    %v338 = vmul.f32 %v280, %v280
    %v339 = vmul.f32 %v285, %v285
    %v340 = vmul.f32 %v290, %v290
    %v341 = vsub.f32 %v325, %v333
    %v342 = vsub.f32 %v326, %v334
    %v343 = vsub.f32 %v327, %v335
    %v344 = vsub.f32 %v328, %v336
    %v345 = vsub.f32 %v329, %v337
    %v346 = vsub.f32 %v330, %v338
    %v347 = vsub.f32 %v331, %v339
    %v348 = vsub.f32 %v332, %v340
    %v349 = vmax.f32 %v341, 0.0
    %v350 = vmax.f32 %v342, 0.0
    %v351 = vmax.f32 %v343, 0.0
    %v352 = vmax.f32 %v344, 0.0
    %v353 = vmax.f32 %v345, 0.0
    %v354 = vmax.f32 %v346, 0.0
    %v355 = vmax.f32 %v347, 0.0
    %v356 = vmax.f32 %v348, 0.0
    %v357 = vadd.f32 %v349, 1e-05
    %v358 = vadd.f32 %v350, 1e-05
    %v359 = vadd.f32 %v351, 1e-05
    %v360 = vadd.f32 %v352, 1e-05
    %v361 = vadd.f32 %v353, 1e-05
    %v362 = vadd.f32 %v354, 1e-05
    %v363 = vadd.f32 %v355, 1e-05
    %v364 = vadd.f32 %v356, 1e-05
    %v365 = vrsqrt.pop %v357
    %v366 = vrsqrt.pop %v358
    %v367 = vrsqrt.pop %v359
    %v368 = vrsqrt.pop %v360
    %v369 = vrsqrt.pop %v361
    %v370 = vrsqrt.pop %v362
    %v371 = vrsqrt.pop %v363
    %v372 = vrsqrt.pop %v364
    %v373 = vmul.f32 %v21, %v365
    %v374 = vmul.f32 %v22, %v366
    %v375 = vmul.f32 %v23, %v367
    %v376 = vmul.f32 %v24, %v368
    %v377 = vmul.f32 %v25, %v369
    %v378 = vmul.f32 %v26, %v370
    %v379 = vmul.f32 %v27, %v371
    %v380 = vmul.f32 %v28, %v372
    %v381 = vmul.f32 %v255, %v373
    %v382 = vmul.f32 %v260, %v374
    %v383 = vmul.f32 %v265, %v375
    %v384 = vmul.f32 %v270, %v376
    %v385 = vmul.f32 %v275, %v377
    %v386 = vmul.f32 %v280, %v378
    %v387 = vmul.f32 %v285, %v379
    %v388 = vmul.f32 %v290, %v380
    %397 = vrot.lane.b32.xlu0 %v381, 1
    %v398 = vpop.permute.xlu0 %397
    %399 = vrot.lane.b32.xlu0 %v382, 1
    %v400 = vpop.permute.xlu0 %399
    %401 = vrot.lane.b32.xlu0 %v383, 1
    %v402 = vpop.permute.xlu0 %401
    %403 = vrot.lane.b32.xlu0 %v384, 1
    %v404 = vpop.permute.xlu0 %403
    %405 = vrot.lane.b32.xlu0 %v385, 1
    %v406 = vpop.permute.xlu0 %405
    %407 = vrot.lane.b32.xlu0 %v386, 1
    %v408 = vpop.permute.xlu0 %407
    %409 = vrot.lane.b32.xlu0 %v387, 1
    %v410 = vpop.permute.xlu0 %409
    %411 = vrot.lane.b32.xlu0 %v388, 1
    %v412 = vpop.permute.xlu0 %411
    %v421 = vsub.f32 %v21, %v398
    %v422 = vsub.f32 %v22, %v400
    %v423 = vsub.f32 %v23, %v402
    %v424 = vsub.f32 %v24, %v404
    %v425 = vsub.f32 %v25, %v406
    %v426 = vsub.f32 %v26, %v408
    %v427 = vsub.f32 %v27, %v410
    %v428 = vsub.f32 %v28, %v412
    %430 = vset.pattern.permute.xlu0 0
    %431 = vperm.xlu0 %430, %v373
    %v432 = vpop.permute.xlu0 %431
    %435 = vset.pattern.permute.xlu0 0
    %436 = vperm.xlu0 %435, %v374
    %v437 = vpop.permute.xlu0 %436
    %440 = vset.pattern.permute.xlu0 0
    %441 = vperm.xlu0 %440, %v375
    %v442 = vpop.permute.xlu0 %441
    %445 = vset.pattern.permute.xlu0 0
    %446 = vperm.xlu0 %445, %v376
    %v447 = vpop.permute.xlu0 %446
    %450 = vset.pattern.permute.xlu0 0
    %451 = vperm.xlu0 %450, %v377
    %v452 = vpop.permute.xlu0 %451
    %455 = vset.pattern.permute.xlu0 0
    %456 = vperm.xlu0 %455, %v378
    %v457 = vpop.permute.xlu0 %456
    %460 = vset.pattern.permute.xlu0 0
    %461 = vperm.xlu0 %460, %v379
    %v462 = vpop.permute.xlu0 %461
    %465 = vset.pattern.permute.xlu0 0
    %466 = vperm.xlu0 %465, %v380
    %v467 = vpop.permute.xlu0 %466
    %v469 = vmul.f32 %v136, %v432
    %v470 = vmul.f32 %v141, %v437
    %v471 = vmul.f32 %v146, %v442
    %v472 = vmul.f32 %v151, %v447
    %v473 = vmul.f32 %v156, %v452
    %v474 = vmul.f32 %v161, %v457
    %v475 = vmul.f32 %v166, %v462
    %v476 = vmul.f32 %v171, %v467
    %478 = vset.pattern.permute.xlu0 1
    %479 = vperm.xlu0 %478, %v421
    %v480 = vpop.permute.xlu0 %479
    %483 = vset.pattern.permute.xlu0 1
    %484 = vperm.xlu0 %483, %v422
    %v485 = vpop.permute.xlu0 %484
    %488 = vset.pattern.permute.xlu0 1
    %489 = vperm.xlu0 %488, %v423
    %v490 = vpop.permute.xlu0 %489
    %493 = vset.pattern.permute.xlu0 1
    %494 = vperm.xlu0 %493, %v424
    %v495 = vpop.permute.xlu0 %494
    %498 = vset.pattern.permute.xlu0 1
    %499 = vperm.xlu0 %498, %v425
    %v500 = vpop.permute.xlu0 %499
    %503 = vset.pattern.permute.xlu0 1
    %504 = vperm.xlu0 %503, %v426
    %v505 = vpop.permute.xlu0 %504
    %508 = vset.pattern.permute.xlu0 1
    %509 = vperm.xlu0 %508, %v427
    %v510 = vpop.permute.xlu0 %509
    %513 = vset.pattern.permute.xlu0 1
    %514 = vperm.xlu0 %513, %v428
    %v515 = vpop.permute.xlu0 %514
    %v517 = vadd.f32 %v469, %v480
    %v518 = vadd.f32 %v470, %v485
    %v519 = vadd.f32 %v471, %v490
    %v520 = vadd.f32 %v472, %v495
    %v521 = vadd.f32 %v473, %v500
    %v522 = vadd.f32 %v474, %v505
    %v523 = vadd.f32 %v475, %v510
    %v524 = vadd.f32 %v476, %v515
    %v525 = vmax.f32 %v517, 0.0
    %v526 = vmax.f32 %v518, 0.0
    %v527 = vmax.f32 %v519, 0.0
    %v528 = vmax.f32 %v520, 0.0
    %v529 = vmax.f32 %v521, 0.0
    %v530 = vmax.f32 %v522, 0.0
    %v531 = vmax.f32 %v523, 0.0
    %v532 = vmax.f32 %v524, 0.0
    %v533 = vld [vmem:[%s2] sm:$0xff]
    %v534 = vld [vmem:[%s2 + $0x8] sm:$0xff]
    %v535 = vld [vmem:[%s2 + $0x10] sm:$0xff]
    %v536 = vld [vmem:[%s2 + $0x18] sm:$0xff]
    %v537 = vld [vmem:[%s2 + $0x20] sm:$0xff]
    %v538 = vld [vmem:[%s2 + $0x28] sm:$0xff]
    %v539 = vld [vmem:[%s2 + $0x30] sm:$0xff]
    %v540 = vld [vmem:[%s2 + $0x38] sm:$0xff]
    %vm541 = vcmask 523264
    %v543 = vsel %vm541, %v533, 0
    %v546 = vsel %vm541, %v534, 0
    %v549 = vsel %vm541, %v535, 0
    %v552 = vsel %vm541, %v536, 0
    %v555 = vsel %vm541, %v537, 0
    %v558 = vsel %vm541, %v538, 0
    %v561 = vsel %vm541, %v539, 0
    %v564 = vsel %vm541, %v540, 0
    %566 = vmatprep.subr.mxu0 0.0
    %567 = vmatpush1.msra.mxu0 %v525
    %568 = vmatprep.subr.mxu0 0.0
    %569 = vmatpush1.msra.mxu0 %v526
    %570 = vmatprep.subr.mxu0 0.0
    %571 = vmatpush1.msra.mxu0 %v527
    %572 = vmatprep.subr.mxu0 0.0
    %573 = vmatpush1.msra.mxu0 %v528
    %574 = vmatprep.subr.mxu0 0.0
    %575 = vmatpush1.msra.mxu0 %v529
    %576 = vmatprep.subr.mxu0 0.0
    %577 = vmatpush1.msra.mxu0 %v530
    %578 = vmatprep.subr.mxu0 0.0
    %579 = vmatpush1.msra.mxu0 %v531
    %580 = vmatprep.subr.mxu0 0.0
    %581 = vmatpush1.msra.mxu0 %v532
    %582 = vmatprep.subr.mxu0 0.0
    %583 = vmatpush1.msra.mxu0 0.0
    %584 = vmatprep.subr.mxu0 0.0
    %585 = vmatpush1.msra.mxu0 0.0
    %586 = vmatprep.subr.mxu0 0.0
    %587 = vmatpush1.msra.mxu0 0.0
    %588 = vmatprep.subr.mxu0 0.0
    %589 = vmatpush1.msra.mxu0 0.0
    %590 = vmatprep.subr.mxu0 0.0
    %591 = vmatpush1.msra.mxu0 0.0
    %592 = vmatprep.subr.mxu0 0.0
    %593 = vmatpush1.msra.mxu0 0.0
    %594 = vmatprep.subr.mxu0 0.0
    %595 = vmatpush1.msra.mxu0 0.0
    %596 = vmatprep.subr.mxu0 0.0
    %597 = vmatpush1.msra.mxu0 0.0
    %598 = vmatprep.subr.mxu0 0.0
    %599 = vmatpush1.msra.mxu0 0.0
    %600 = vmatprep.subr.mxu0 0.0
    %601 = vmatpush1.msra.mxu0 0.0
    %602 = vmatprep.subr.mxu0 0.0
    %603 = vmatpush1.msra.mxu0 0.0
    %604 = vmatprep.subr.mxu0 0.0
    %605 = vmatpush1.msra.mxu0 0.0
    %606 = vmatprep.subr.mxu0 0.0
    %607 = vmatpush1.msra.mxu0 0.0
    %608 = vmatprep.subr.mxu0 0.0
    %609 = vmatpush1.msra.mxu0 0.0
    %610 = vmatprep.subr.mxu0 0.0
    %611 = vmatpush1.msra.mxu0 0.0
    %612 = vmatprep.subr.mxu0 0.0
    %613 = vmatpush1.msra.mxu0 0.0
    %614 = vmatprep.subr.mxu0 0.0
    %615 = vmatpush1.msra.mxu0 0.0
    %616 = vmatprep.subr.mxu0 0.0
    %617 = vmatpush1.msra.mxu0 0.0
    %618 = vmatprep.subr.mxu0 0.0
    %619 = vmatpush1.msra.mxu0 0.0
    %620 = vmatprep.subr.mxu0 0.0
    %621 = vmatpush1.msra.mxu0 0.0
    %622 = vmatprep.subr.mxu0 0.0
    %623 = vmatpush1.msra.mxu0 0.0
    %624 = vmatprep.subr.mxu0 0.0
    %625 = vmatpush1.msra.mxu0 0.0
    %626 = vmatprep.subr.mxu0 0.0
    %627 = vmatpush1.msra.mxu0 0.0
    %628 = vmatprep.subr.mxu0 0.0
    %629 = vmatpush1.msra.mxu0 0.0
    %630 = vmatprep.mubr.f32.mxu0 0.0
    %631 = vmatmul.mubr.f32.gmra.mrb[0].mxu0 %v543
    %v632 = vpop.f32.mrb[0].mxu0
    %v633 = vadd.f32 0.0, %v632
    %v634 = vpop.f32.mrb[0].mxu0
    %635 = vmatprep.mubr.f32.mxu0 0.0
    %636 = vmatmul.mubr.f32.gmra.mrb[0].mxu0 %v546
    %v637 = vpop.f32.mrb[0].mxu0
    %v638 = vadd.f32 0.0, %v637
    %v639 = vpop.f32.mrb[0].mxu0
    %640 = vmatprep.mubr.f32.mxu0 0.0
    %641 = vmatmul.mubr.f32.gmra.mrb[0].mxu0 %v549
    %v642 = vpop.f32.mrb[0].mxu0
    %v643 = vadd.f32 0.0, %v642
    %v644 = vpop.f32.mrb[0].mxu0
    %645 = vmatprep.mubr.f32.mxu0 0.0
    %646 = vmatmul.mubr.f32.gmra.mrb[0].mxu0 %v552
    %v647 = vpop.f32.mrb[0].mxu0
    %v648 = vadd.f32 0.0, %v647
    %v649 = vpop.f32.mrb[0].mxu0
    %650 = vmatprep.mubr.f32.mxu0 0.0
    %651 = vmatmul.mubr.f32.gmra.mrb[0].mxu0 %v555
    %v652 = vpop.f32.mrb[0].mxu0
    %v653 = vadd.f32 0.0, %v652
    %v654 = vpop.f32.mrb[0].mxu0
    %655 = vmatprep.mubr.f32.mxu0 0.0
    %656 = vmatmul.mubr.f32.gmra.mrb[0].mxu0 %v558
    %v657 = vpop.f32.mrb[0].mxu0
    %v658 = vadd.f32 0.0, %v657
    %v659 = vpop.f32.mrb[0].mxu0
    %660 = vmatprep.mubr.f32.mxu0 0.0
    %661 = vmatmul.mubr.f32.gmra.mrb[0].mxu0 %v561
    %v662 = vpop.f32.mrb[0].mxu0
    %v663 = vadd.f32 0.0, %v662
    %v664 = vpop.f32.mrb[0].mxu0
    %665 = vmatprep.mubr.f32.mxu0 0.0
    %666 = vmatmul.mubr.f32.gmra.mrb[0].mxu0 %v564
    %v667 = vpop.f32.mrb[0].mxu0
    %v668 = vadd.f32 0.0, %v667
    %v669 = vpop.f32.mrb[0].mxu0
    %670 = vdwg.mxu0
    %v671 = vsel %vm174, %v633, 0.0
    %672 = vadd.xlane.f32.xlu0 %v671
    %v673 = vpop.xlane.xlu0 %672
    %v674 = vsel %vm174, %v638, 0.0
    %675 = vadd.xlane.f32.xlu0 %v674
    %v676 = vpop.xlane.xlu0 %675
    %v677 = vsel %vm174, %v643, 0.0
    %678 = vadd.xlane.f32.xlu0 %v677
    %v679 = vpop.xlane.xlu0 %678
    %v680 = vsel %vm174, %v648, 0.0
    %681 = vadd.xlane.f32.xlu0 %v680
    %v682 = vpop.xlane.xlu0 %681
    %v683 = vsel %vm174, %v653, 0.0
    %684 = vadd.xlane.f32.xlu0 %v683
    %v685 = vpop.xlane.xlu0 %684
    %v686 = vsel %vm174, %v658, 0.0
    %687 = vadd.xlane.f32.xlu0 %v686
    %v688 = vpop.xlane.xlu0 %687
    %v689 = vsel %vm174, %v663, 0.0
    %690 = vadd.xlane.f32.xlu0 %v689
    %v691 = vpop.xlane.xlu0 %690
    %v692 = vsel %vm174, %v668, 0.0
    %693 = vadd.xlane.f32.xlu0 %v692
    %v694 = vpop.xlane.xlu0 %693
    %v695 = vmul.f32 %v673, %v182
    %v696 = vmul.f32 %v676, %v182
    %v697 = vmul.f32 %v679, %v182
    %v698 = vmul.f32 %v682, %v182
    %v699 = vmul.f32 %v685, %v182
    %v700 = vmul.f32 %v688, %v182
    %v701 = vmul.f32 %v691, %v182
    %v702 = vmul.f32 %v694, %v182
    %v703 = vmul.f32 %v633, %v633
    %v704 = vmul.f32 %v638, %v638
    %v705 = vmul.f32 %v643, %v643
    %v706 = vmul.f32 %v648, %v648
    %v707 = vmul.f32 %v653, %v653
    %v708 = vmul.f32 %v658, %v658
    %v709 = vmul.f32 %v663, %v663
    %v710 = vmul.f32 %v668, %v668
    %v711 = vsel %vm174, %v703, 0.0
    %712 = vadd.xlane.f32.xlu0 %v711
    %v713 = vpop.xlane.xlu0 %712
    %v714 = vsel %vm174, %v704, 0.0
    %715 = vadd.xlane.f32.xlu0 %v714
    %v716 = vpop.xlane.xlu0 %715
    %v717 = vsel %vm174, %v705, 0.0
    %718 = vadd.xlane.f32.xlu0 %v717
    %v719 = vpop.xlane.xlu0 %718
    %v720 = vsel %vm174, %v706, 0.0
    %721 = vadd.xlane.f32.xlu0 %v720
    %v722 = vpop.xlane.xlu0 %721
    %v723 = vsel %vm174, %v707, 0.0
    %724 = vadd.xlane.f32.xlu0 %v723
    %v725 = vpop.xlane.xlu0 %724
    %v726 = vsel %vm174, %v708, 0.0
    %727 = vadd.xlane.f32.xlu0 %v726
    %v728 = vpop.xlane.xlu0 %727
    %v729 = vsel %vm174, %v709, 0.0
    %730 = vadd.xlane.f32.xlu0 %v729
    %v731 = vpop.xlane.xlu0 %730
    %v732 = vsel %vm174, %v710, 0.0
    %733 = vadd.xlane.f32.xlu0 %v732
    %v734 = vpop.xlane.xlu0 %733
    %v735 = vmul.f32 %v713, %v182
    %v736 = vmul.f32 %v716, %v182
    %v737 = vmul.f32 %v719, %v182
    %v738 = vmul.f32 %v722, %v182
    %v739 = vmul.f32 %v725, %v182
    %v740 = vmul.f32 %v728, %v182
    %v741 = vmul.f32 %v731, %v182
    %v742 = vmul.f32 %v734, %v182
    %v743 = vmul.f32 %v695, %v695
    %v744 = vmul.f32 %v696, %v696
    %v745 = vmul.f32 %v697, %v697
    %v746 = vmul.f32 %v698, %v698
    %v747 = vmul.f32 %v699, %v699
    %v748 = vmul.f32 %v700, %v700
    %v749 = vmul.f32 %v701, %v701
    %v750 = vmul.f32 %v702, %v702
    %v751 = vsub.f32 %v735, %v743
    %v752 = vsub.f32 %v736, %v744
    %v753 = vsub.f32 %v737, %v745
    %v754 = vsub.f32 %v738, %v746
    %v755 = vsub.f32 %v739, %v747
    %v756 = vsub.f32 %v740, %v748
    %v757 = vsub.f32 %v741, %v749
    %v758 = vsub.f32 %v742, %v750
    %v759 = vmax.f32 %v751, 0.0
    %v760 = vmax.f32 %v752, 0.0
    %v761 = vmax.f32 %v753, 0.0
    %v762 = vmax.f32 %v754, 0.0
    %v763 = vmax.f32 %v755, 0.0
    %v764 = vmax.f32 %v756, 0.0
    %v765 = vmax.f32 %v757, 0.0
    %v766 = vmax.f32 %v758, 0.0
    %v767 = vadd.f32 %v759, 1e-05
    %v768 = vadd.f32 %v760, 1e-05
    %v769 = vadd.f32 %v761, 1e-05
    %v770 = vadd.f32 %v762, 1e-05
    %v771 = vadd.f32 %v763, 1e-05
    %v772 = vadd.f32 %v764, 1e-05
    %v773 = vadd.f32 %v765, 1e-05
    %v774 = vadd.f32 %v766, 1e-05
    %v775 = vrsqrt.pop %v767
    %v776 = vrsqrt.pop %v768
    %v777 = vrsqrt.pop %v769
    %v778 = vrsqrt.pop %v770
    %v779 = vrsqrt.pop %v771
    %v780 = vrsqrt.pop %v772
    %v781 = vrsqrt.pop %v773
    %v782 = vrsqrt.pop %v774
    %v783 = vmul.f32 %v21, %v775
    %v784 = vmul.f32 %v22, %v776
    %v785 = vmul.f32 %v23, %v777
    %v786 = vmul.f32 %v24, %v778
    %v787 = vmul.f32 %v25, %v779
    %v788 = vmul.f32 %v26, %v780
    %v789 = vmul.f32 %v27, %v781
    %v790 = vmul.f32 %v28, %v782
    %v791 = vmul.f32 %v695, %v783
    %v792 = vmul.f32 %v696, %v784
    %v793 = vmul.f32 %v697, %v785
    %v794 = vmul.f32 %v698, %v786
    %v795 = vmul.f32 %v699, %v787
    %v796 = vmul.f32 %v700, %v788
    %v797 = vmul.f32 %v701, %v789
    %v798 = vmul.f32 %v702, %v790
    %807 = vrot.lane.b32.xlu0 %v791, 1
    %v808 = vpop.permute.xlu0 %807
    %809 = vrot.lane.b32.xlu0 %v792, 1
    %v810 = vpop.permute.xlu0 %809
    %811 = vrot.lane.b32.xlu0 %v793, 1
    %v812 = vpop.permute.xlu0 %811
    %813 = vrot.lane.b32.xlu0 %v794, 1
    %v814 = vpop.permute.xlu0 %813
    %815 = vrot.lane.b32.xlu0 %v795, 1
    %v816 = vpop.permute.xlu0 %815
    %817 = vrot.lane.b32.xlu0 %v796, 1
    %v818 = vpop.permute.xlu0 %817
    %819 = vrot.lane.b32.xlu0 %v797, 1
    %v820 = vpop.permute.xlu0 %819
    %821 = vrot.lane.b32.xlu0 %v798, 1
    %v822 = vpop.permute.xlu0 %821
    %v831 = vsub.f32 %v21, %v808
    %v832 = vsub.f32 %v22, %v810
    %v833 = vsub.f32 %v23, %v812
    %v834 = vsub.f32 %v24, %v814
    %v835 = vsub.f32 %v25, %v816
    %v836 = vsub.f32 %v26, %v818
    %v837 = vsub.f32 %v27, %v820
    %v838 = vsub.f32 %v28, %v822
    %840 = vset.pattern.permute.xlu0 2
    %841 = vperm.xlu0 %840, %v783
    %v842 = vpop.permute.xlu0 %841
    %845 = vset.pattern.permute.xlu0 2
    %846 = vperm.xlu0 %845, %v784
    %v847 = vpop.permute.xlu0 %846
    %850 = vset.pattern.permute.xlu0 2
    %851 = vperm.xlu0 %850, %v785
    %v852 = vpop.permute.xlu0 %851
    %855 = vset.pattern.permute.xlu0 2
    %856 = vperm.xlu0 %855, %v786
    %v857 = vpop.permute.xlu0 %856
    %860 = vset.pattern.permute.xlu0 2
    %861 = vperm.xlu0 %860, %v787
    %v862 = vpop.permute.xlu0 %861
    %865 = vset.pattern.permute.xlu0 2
    %866 = vperm.xlu0 %865, %v788
    %v867 = vpop.permute.xlu0 %866
    %870 = vset.pattern.permute.xlu0 2
    %871 = vperm.xlu0 %870, %v789
    %v872 = vpop.permute.xlu0 %871
    %875 = vset.pattern.permute.xlu0 2
    %876 = vperm.xlu0 %875, %v790
    %v877 = vpop.permute.xlu0 %876
    %v879 = vmul.f32 %v633, %v842
    %v880 = vmul.f32 %v638, %v847
    %v881 = vmul.f32 %v643, %v852
    %v882 = vmul.f32 %v648, %v857
    %v883 = vmul.f32 %v653, %v862
    %v884 = vmul.f32 %v658, %v867
    %v885 = vmul.f32 %v663, %v872
    %v886 = vmul.f32 %v668, %v877
    %888 = vset.pattern.permute.xlu0 3
    %889 = vperm.xlu0 %888, %v831
    %v890 = vpop.permute.xlu0 %889
    %893 = vset.pattern.permute.xlu0 3
    %894 = vperm.xlu0 %893, %v832
    %v895 = vpop.permute.xlu0 %894
    %898 = vset.pattern.permute.xlu0 3
    %899 = vperm.xlu0 %898, %v833
    %v900 = vpop.permute.xlu0 %899
    %903 = vset.pattern.permute.xlu0 3
    %904 = vperm.xlu0 %903, %v834
    %v905 = vpop.permute.xlu0 %904
    %908 = vset.pattern.permute.xlu0 3
    %909 = vperm.xlu0 %908, %v835
    %v910 = vpop.permute.xlu0 %909
    %913 = vset.pattern.permute.xlu0 3
    %914 = vperm.xlu0 %913, %v836
    %v915 = vpop.permute.xlu0 %914
    %918 = vset.pattern.permute.xlu0 3
    %919 = vperm.xlu0 %918, %v837
    %v920 = vpop.permute.xlu0 %919
    %923 = vset.pattern.permute.xlu0 3
    %924 = vperm.xlu0 %923, %v838
    %v925 = vpop.permute.xlu0 %924
    %v927 = vadd.f32 %v879, %v890
    %v928 = vadd.f32 %v880, %v895
    %v929 = vadd.f32 %v881, %v900
    %v930 = vadd.f32 %v882, %v905
    %v931 = vadd.f32 %v883, %v910
    %v932 = vadd.f32 %v884, %v915
    %v933 = vadd.f32 %v885, %v920
    %v934 = vadd.f32 %v886, %v925
    %v935 = vmax.f32 %v927, 0.0
    %v936 = vmax.f32 %v928, 0.0
    %v937 = vmax.f32 %v929, 0.0
    %v938 = vmax.f32 %v930, 0.0
    %v939 = vmax.f32 %v931, 0.0
    %v940 = vmax.f32 %v932, 0.0
    %v941 = vmax.f32 %v933, 0.0
    %v942 = vmax.f32 %v934, 0.0
    %v943 = vld [vmem:[%s3] sm:$0xf]
    %945 = vset.pattern.permute.xlu0 4
    %946 = vperm.xlu0 %945, %v29
    %v947 = vpop.permute.xlu0 %946
    %v950 = vsel %vm541, %v943, 0
    %952 = vmatprep.subr.mxu0 0.0
    %953 = vmatpush1.msra.mxu0 %v935
    %954 = vmatprep.subr.mxu0 0.0
    %955 = vmatpush1.msra.mxu0 %v936
    %956 = vmatprep.subr.mxu0 0.0
    %957 = vmatpush1.msra.mxu0 %v937
    %958 = vmatprep.subr.mxu0 0.0
    %959 = vmatpush1.msra.mxu0 %v938
    %960 = vmatprep.subr.mxu0 0.0
    %961 = vmatpush1.msra.mxu0 %v939
    %962 = vmatprep.subr.mxu0 0.0
    %963 = vmatpush1.msra.mxu0 %v940
    %964 = vmatprep.subr.mxu0 0.0
    %965 = vmatpush1.msra.mxu0 %v941
    %966 = vmatprep.subr.mxu0 0.0
    %967 = vmatpush1.msra.mxu0 %v942
    %968 = vmatprep.subr.mxu0 0.0
    %969 = vmatpush1.msra.mxu0 0.0
    %970 = vmatprep.subr.mxu0 0.0
    %971 = vmatpush1.msra.mxu0 0.0
    %972 = vmatprep.subr.mxu0 0.0
    %973 = vmatpush1.msra.mxu0 0.0
    %974 = vmatprep.subr.mxu0 0.0
    %975 = vmatpush1.msra.mxu0 0.0
    %976 = vmatprep.subr.mxu0 0.0
    %977 = vmatpush1.msra.mxu0 0.0
    %978 = vmatprep.subr.mxu0 0.0
    %979 = vmatpush1.msra.mxu0 0.0
    %980 = vmatprep.subr.mxu0 0.0
    %981 = vmatpush1.msra.mxu0 0.0
    %982 = vmatprep.subr.mxu0 0.0
    %983 = vmatpush1.msra.mxu0 0.0
    %984 = vmatprep.subr.mxu0 0.0
    %985 = vmatpush1.msra.mxu0 0.0
    %986 = vmatprep.subr.mxu0 0.0
    %987 = vmatpush1.msra.mxu0 0.0
    %988 = vmatprep.subr.mxu0 0.0
    %989 = vmatpush1.msra.mxu0 0.0
    %990 = vmatprep.subr.mxu0 0.0
    %991 = vmatpush1.msra.mxu0 0.0
    %992 = vmatprep.subr.mxu0 0.0
    %993 = vmatpush1.msra.mxu0 0.0
    %994 = vmatprep.subr.mxu0 0.0
    %995 = vmatpush1.msra.mxu0 0.0
    %996 = vmatprep.subr.mxu0 0.0
    %997 = vmatpush1.msra.mxu0 0.0
    %998 = vmatprep.subr.mxu0 0.0
    %999 = vmatpush1.msra.mxu0 0.0
    %1000 = vmatprep.subr.mxu0 0.0
    %1001 = vmatpush1.msra.mxu0 0.0
    %1002 = vmatprep.subr.mxu0 0.0
    %1003 = vmatpush1.msra.mxu0 0.0
    %1004 = vmatprep.subr.mxu0 0.0
    %1005 = vmatpush1.msra.mxu0 0.0
    %1006 = vmatprep.subr.mxu0 0.0
    %1007 = vmatpush1.msra.mxu0 0.0
    %1008 = vmatprep.subr.mxu0 0.0
    %1009 = vmatpush1.msra.mxu0 0.0
    %1010 = vmatprep.subr.mxu0 0.0
    %1011 = vmatpush1.msra.mxu0 0.0
    %1012 = vmatprep.subr.mxu0 0.0
    %1013 = vmatpush1.msra.mxu0 0.0
    %1014 = vmatprep.subr.mxu0 0.0
    %1015 = vmatpush1.msra.mxu0 0.0
    %1016 = vmatprep.mubr.f32.mxu0 0.0
    %1017 = vmatmul.mubr.f32.gmra.mrb[0].mxu0 %v950
    %v1018 = vpop.f32.mrb[0].mxu0
    %v1019 = vadd.f32 %v947, %v1018
    %v1020 = vpop.f32.mrb[0].mxu0
    %1021 = vdwg.mxu0
    %vm1022 = vcmask 60416
    %v1023 = vsel %vm1022, %v1019, -inf
    %v1024 = vrot.slane %v1023, 4
    %v1025 = vmax.f32 %v1023, %v1024
    %v1026 = vrot.slane %v1025, 2
    %v1027 = vmax.f32 %v1025, %v1026
    %v1028 = vrot.slane %v1027, 1
    %v1029 = vmax.f32 %v1027, %v1028
    %v1030 = vsub.f32 %v1019, %v1029
    %v1031 = vmul.f32 %v1030, 1.442695
    %v1032 = vpow.pop %v1031
    %v1033 = vsel %vm1022, %v1032, 0.0
    %v1034 = vrot.slane %v1033, 4
    %v1035 = vadd.f32 %v1033, %v1034
    %v1036 = vrot.slane %v1035, 2
    %v1037 = vadd.f32 %v1035, %v1036
    %v1038 = vrot.slane %v1037, 1
    %v1039 = vadd.f32 %v1037, %v1038
    %v1040 = vrcp.pop %v1039
    %v1041 = vmul.f32 %v1032, %v1040
    %1042 = vst.msk [vmem:[#allocation2] sm:$0xf] %vm1022, %v1041
    // Predicated region
    $region22: #{tpu_custom_call.1} parent=1 // pred_check
      _
    $region23: #{tpu_custom_call.1} parent=1 // pred_check_branch
      %1044 = sbr.rel (0) target = $region25
    $region24: #{tpu_custom_call.1} parent=1 // pred_region
      %s1046 = ssub.s32 64, 64
      %1047 = vsyncadd [#allocation3], %s1046
      %s1049 = sshll.u32 [#allocation2], 4
      %s1050 = int_to_ptr.vmem [resolvable:$true] %s1049
      %1052 = dma.vmem_to_hbm [thread:$0]  %s1050, 64, %s5, [#allocation3]
    $region25: #{tpu_custom_call.1} parent=1 // pred_fallthru
      _
    // Predicated region
    $region26: #{tpu_custom_call.1} parent=1 // pred_check
      _
    $region27: #{tpu_custom_call.1} parent=1 // pred_check_branch
      %1054 = sbr.rel (0) target = $region29
    $region28: #{tpu_custom_call.1} parent=1 // pred_region
      %1055 = dma.done [#allocation3], 64
    $region29: #{tpu_custom_call.1} parent=1 // pred_fallthru
      _
    %1056 = vsyncpa [#allocation3], 1

</llo_original>
